<compile_context>
chip_gen: v7x
topology: tpu7x:2x2x1
jax: 0.10.0
libtpu: 0.0.40
codegen_flags: <defaults>
</compile_context>

<pallas_src>
import jax
import jax.numpy as jnp
from jax.experimental import pallas as pl
from jax.experimental.pallas import tpu as pltpu

IN_DIM = 28 * 28        # 784
IN_PAD = 7 * 128        # 896  (lane-aligned feature dim)
H1 = 64
H2 = 10

_MAX_TILE_B = 512       # multiple of 256; double-buffered x+out (f32) ~7 MB


def _round_up(n, m):
    return ((n + m - 1) // m) * m


def _autoencoder_kernel(x_ref,
                        w1_ref, b1_ref,
                        w2_ref, b2_ref,
                        w3_ref, b3_ref,
                        w4_ref, b4_ref,
                        out_ref):
    """Fused 4-layer MLP: all matmuls + bias + ReLU in one kernel invocation.

    Matmuls accumulate in f32 (preferred_element_type); bias add / ReLU in f32;
    activations are cast back to the weight dtype (no-op for f32, bf16 when the
    wrapper requested bf16 inputs) before feeding the next MXU matmul.
    """
    x = x_ref[...]                                                   # (TB, 896)

    h = jnp.dot(x, w1_ref[...], preferred_element_type=jnp.float32) + b1_ref[...]
    h = jnp.maximum(h, 0.0).astype(w2_ref.dtype)                     # (TB, 64)

    h = jnp.dot(h, w2_ref[...], preferred_element_type=jnp.float32) + b2_ref[...]
    h = jnp.maximum(h, 0.0).astype(w3_ref.dtype)                     # (TB, 10)

    h = jnp.dot(h, w3_ref[...], preferred_element_type=jnp.float32) + b3_ref[...]
    h = jnp.maximum(h, 0.0).astype(w4_ref.dtype)                     # (TB, 64)

    out = jnp.dot(h, w4_ref[...], preferred_element_type=jnp.float32) + b4_ref[...]
    out_ref[...] = out.astype(out_ref.dtype)                         # (TB, 896)


def autoencoder_forward(x, params, *, tile_b=None, use_bf16=False):
    """Run the fused autoencoder MLP kernel.

    x: (B, 784) float32 — any B (wrapper pads to a tile multiple).
    params: dict with w1..w4 stored as (in, out) and b1..b4 stored as (1, out).
    tile_b: batch tile; None -> auto (whole batch for small B, 512 otherwise).
    use_bf16: cast x and weights to bf16 (f32 accumulation) to halve HBM traffic.
    """
    B, D = x.shape
    assert D == IN_DIM

    if tile_b is None:
        tile_b = _round_up(B, 8) if B <= _MAX_TILE_B else _MAX_TILE_B
    assert tile_b % 8 == 0
    b_pad = _round_up(B, tile_b)

    w1, b1 = params["w1"], params["b1"]
    w2, b2 = params["w2"], params["b2"]
    w3, b3 = params["w3"], params["b3"]
    w4, b4 = params["w4"], params["b4"]

    # Lane-align the 784 dim to 896: pad x columns, w1 rows, w4/b4 columns
    # with zeros (mathematically a no-op); pad batch rows to the tile multiple.
    pad_f = IN_PAD - IN_DIM
    x_p = jnp.pad(x, ((0, b_pad - B), (0, pad_f)))
    w1_p = jnp.pad(w1, ((0, pad_f), (0, 0)))
    w4_p = jnp.pad(w4, ((0, 0), (0, pad_f)))
    b4_p = jnp.pad(b4, ((0, 0), (0, pad_f)))

    if use_bf16:
        x_p = x_p.astype(jnp.bfloat16)
        w1_p = w1_p.astype(jnp.bfloat16)
        w2 = w2.astype(jnp.bfloat16)
        w3 = w3.astype(jnp.bfloat16)
        w4_p = w4_p.astype(jnp.bfloat16)
    # Biases stay f32: added after the f32 accumulation.

    # Weights/biases are tiny (<1 MB total); give every grid step the full
    # parameter block and only tile the batch dimension of x / out.
    full = lambda arr: pl.BlockSpec(arr.shape, lambda i: (0, 0))

    out_padded = pl.pallas_call(
        _autoencoder_kernel,
        out_shape=jax.ShapeDtypeStruct((b_pad, IN_PAD), jnp.float32),
        grid_spec=pltpu.PrefetchScalarGridSpec(
            num_scalar_prefetch=0,
            grid=(b_pad // tile_b,),
            in_specs=[
                pl.BlockSpec((tile_b, IN_PAD), lambda i: (i, 0)),   # x tile
                full(w1_p), full(b1),
                full(w2), full(b2),
                full(w3), full(b3),
                full(w4_p), full(b4_p),
            ],
            out_specs=pl.BlockSpec((tile_b, IN_PAD), lambda i: (i, 0)),
        ),
        compiler_params=pltpu.CompilerParams(
            dimension_semantics=("parallel",)),
    )(x_p, w1_p, b1, w2, b2, w3, b3, w4_p, b4_p)

    return out_padded[:B, :IN_DIM]


def init_params(key):
    """Deterministic init mimicking PyTorch nn.Linear default:
    U(-1/sqrt(fan_in), 1/sqrt(fan_in)). Weights stored as (in, out)."""
    dims = [(IN_DIM, H1), (H1, H2), (H2, H1), (H1, IN_DIM)]
    params = {}
    keys = jax.random.split(key, 2 * len(dims))
    for idx, (fan_in, fan_out) in enumerate(dims):
        bound = 1.0 / jnp.sqrt(float(fan_in))
        w = jax.random.uniform(keys[2 * idx], (fan_in, fan_out),
                               jnp.float32, -bound, bound)
        b = jax.random.uniform(keys[2 * idx + 1], (1, fan_out),
                               jnp.float32, -bound, bound)
        params[f"w{idx + 1}"] = w
        params[f"b{idx + 1}"] = b
    return params


def reference_forward(x, p):
    """Plain-JAX reference of the PyTorch forward (mode='standard')."""
    h = jax.nn.relu(x @ p["w1"] + p["b1"])
    h = jax.nn.relu(h @ p["w2"] + p["b2"])
    h = jax.nn.relu(h @ p["w3"] + p["b3"])
    return h @ p["w4"] + p["b4"]


if __name__ == "__main__":
    key = jax.random.PRNGKey(0)
    pkey, xkey = jax.random.split(key)
    params = init_params(pkey)

    # Small demo batch: single grid step, f32.
    batch = 8
    x = jax.random.normal(xkey, (batch, IN_DIM), dtype=jnp.float32)
    out = jax.block_until_ready(autoencoder_forward(x, params))
    ref = reference_forward(x, params)
    assert out.shape == (batch, IN_DIM)
    assert jnp.allclose(out, ref, atol=1e-4, rtol=1e-4), "f32 mismatch vs reference"

    # Multi-step grid path (non-multiple batch forces wrapper padding).
    batch2 = 20
    x2 = jax.random.normal(jax.random.PRNGKey(1), (batch2, IN_DIM), dtype=jnp.float32)
    out2 = jax.block_until_ready(autoencoder_forward(x2, params, tile_b=8))
    ref2 = reference_forward(x2, params)
    assert out2.shape == (batch2, IN_DIM)
    assert jnp.allclose(out2, ref2, atol=1e-4, rtol=1e-4), "tiled f32 mismatch"

    # bf16 HBM-traffic-halving path (f32 accumulation) — looser tolerance.
    out_bf16 = jax.block_until_ready(autoencoder_forward(x, params, use_bf16=True))
    assert out_bf16.shape == (batch, IN_DIM)
    assert jnp.allclose(out_bf16, ref, atol=1e-1, rtol=1e-1), "bf16 mismatch"

    print("KERNEL_OK")
</pallas_src>

<mosaic_0001>
module attributes {stable_mosaic.version = 11 : i64} {
  func.func @_autoencoder_kernel(%arg0: i32, %arg1: memref<8x896xf32, #tpu.memory_space<vmem>>, %arg2: memref<896x64xf32, #tpu.memory_space<vmem>>, %arg3: memref<1x64xf32, #tpu.memory_space<vmem>>, %arg4: memref<64x10xf32, #tpu.memory_space<vmem>>, %arg5: memref<1x10xf32, #tpu.memory_space<vmem>>, %arg6: memref<10x64xf32, #tpu.memory_space<vmem>>, %arg7: memref<1x64xf32, #tpu.memory_space<vmem>>, %arg8: memref<64x896xf32, #tpu.memory_space<vmem>>, %arg9: memref<1x896xf32, #tpu.memory_space<vmem>>, %arg10: memref<8x896xf32, #tpu.memory_space<vmem>>) attributes {dimension_semantics = [#tpu.dimension_semantics<parallel>], iteration_bounds = array<i64: 1>, scalar_prefetch = 0 : i64, scratch_operands = 0 : i64, tpu.core_type = #tpu.core_type<tc>, window_params = [{transform_indices = @transform_0, window_bounds = array<i64: 8, 896>}, {pipeline_mode = #tpu.pipeline_mode<synchronous>, transform_indices = @transform_1, window_bounds = array<i64: 896, 64>}, {pipeline_mode = #tpu.pipeline_mode<synchronous>, transform_indices = @transform_2, window_bounds = array<i64: 1, 64>}, {pipeline_mode = #tpu.pipeline_mode<synchronous>, transform_indices = @transform_3, window_bounds = array<i64: 64, 10>}, {pipeline_mode = #tpu.pipeline_mode<synchronous>, transform_indices = @transform_4, window_bounds = array<i64: 1, 10>}, {pipeline_mode = #tpu.pipeline_mode<synchronous>, transform_indices = @transform_5, window_bounds = array<i64: 10, 64>}, {pipeline_mode = #tpu.pipeline_mode<synchronous>, transform_indices = @transform_6, window_bounds = array<i64: 1, 64>}, {pipeline_mode = #tpu.pipeline_mode<synchronous>, transform_indices = @transform_7, window_bounds = array<i64: 64, 896>}, {pipeline_mode = #tpu.pipeline_mode<synchronous>, transform_indices = @transform_8, window_bounds = array<i64: 1, 896>}, {transform_indices = @transform_9, window_bounds = array<i64: 8, 896>}]} {
    %c0 = arith.constant 0 : index
    %c0_0 = arith.constant 0 : index
    %0 = vector.load %arg1[%c0, %c0_0] : memref<8x896xf32, #tpu.memory_space<vmem>>, vector<8x896xf32>
    %c0_1 = arith.constant 0 : index
    %c0_2 = arith.constant 0 : index
    %1 = vector.load %arg2[%c0_1, %c0_2] : memref<896x64xf32, #tpu.memory_space<vmem>>, vector<896x64xf32>
    %cst = arith.constant dense<0.000000e+00> : vector<8x64xf32>
    %2 = tpu.matmul %0, %1, %cst {dimension_numbers = #tpu.dot_dimension_numbers<[1], [0], [0], [1], [0, 0, 1, 1], [], []>} : vector<8x896xf32>, vector<896x64xf32>, vector<8x64xf32> -> vector<8x64xf32>
    %c0_3 = arith.constant 0 : index
    %c0_4 = arith.constant 0 : index
    %3 = vector.load %arg3[%c0_3, %c0_4] : memref<1x64xf32, #tpu.memory_space<vmem>>, vector<1x64xf32>
    %4 = vector.broadcast %3 : vector<1x64xf32> to vector<8x64xf32>
    %5 = arith.addf %2, %4 : vector<8x64xf32>
    %cst_5 = arith.constant 0.000000e+00 : f32
    %6 = vector.broadcast %cst_5 : f32 to vector<8x64xf32>
    %7 = arith.maximumf %5, %6 : vector<8x64xf32>
    %c0_6 = arith.constant 0 : index
    %c0_7 = arith.constant 0 : index
    %8 = vector.load %arg4[%c0_6, %c0_7] : memref<64x10xf32, #tpu.memory_space<vmem>>, vector<64x10xf32>
    %cst_8 = arith.constant dense<0.000000e+00> : vector<8x10xf32>
    %9 = tpu.matmul %7, %8, %cst_8 {dimension_numbers = #tpu.dot_dimension_numbers<[1], [0], [0], [1], [0, 0, 1, 1], [], []>} : vector<8x64xf32>, vector<64x10xf32>, vector<8x10xf32> -> vector<8x10xf32>
    %c0_9 = arith.constant 0 : index
    %c0_10 = arith.constant 0 : index
    %10 = vector.load %arg5[%c0_9, %c0_10] : memref<1x10xf32, #tpu.memory_space<vmem>>, vector<1x10xf32>
    %11 = vector.broadcast %10 : vector<1x10xf32> to vector<8x10xf32>
    %12 = arith.addf %9, %11 : vector<8x10xf32>
    %cst_11 = arith.constant 0.000000e+00 : f32
    %13 = vector.broadcast %cst_11 : f32 to vector<8x10xf32>
    %14 = arith.maximumf %12, %13 : vector<8x10xf32>
    %c0_12 = arith.constant 0 : index
    %c0_13 = arith.constant 0 : index
    %15 = vector.load %arg6[%c0_12, %c0_13] : memref<10x64xf32, #tpu.memory_space<vmem>>, vector<10x64xf32>
    %cst_14 = arith.constant dense<0.000000e+00> : vector<8x64xf32>
    %16 = tpu.matmul %14, %15, %cst_14 {dimension_numbers = #tpu.dot_dimension_numbers<[1], [0], [0], [1], [0, 0, 1, 1], [], []>} : vector<8x10xf32>, vector<10x64xf32>, vector<8x64xf32> -> vector<8x64xf32>
    %c0_15 = arith.constant 0 : index
    %c0_16 = arith.constant 0 : index
    %17 = vector.load %arg7[%c0_15, %c0_16] : memref<1x64xf32, #tpu.memory_space<vmem>>, vector<1x64xf32>
    %18 = vector.broadcast %17 : vector<1x64xf32> to vector<8x64xf32>
    %19 = arith.addf %16, %18 : vector<8x64xf32>
    %cst_17 = arith.constant 0.000000e+00 : f32
    %20 = vector.broadcast %cst_17 : f32 to vector<8x64xf32>
    %21 = arith.maximumf %19, %20 : vector<8x64xf32>
    %c0_18 = arith.constant 0 : index
    %c0_19 = arith.constant 0 : index
    %22 = vector.load %arg8[%c0_18, %c0_19] : memref<64x896xf32, #tpu.memory_space<vmem>>, vector<64x896xf32>
    %cst_20 = arith.constant dense<0.000000e+00> : vector<8x896xf32>
    %23 = tpu.matmul %21, %22, %cst_20 {dimension_numbers = #tpu.dot_dimension_numbers<[1], [0], [0], [1], [0, 0, 1, 1], [], []>} : vector<8x64xf32>, vector<64x896xf32>, vector<8x896xf32> -> vector<8x896xf32>
    %c0_21 = arith.constant 0 : index
    %c0_22 = arith.constant 0 : index
    %24 = vector.load %arg9[%c0_21, %c0_22] : memref<1x896xf32, #tpu.memory_space<vmem>>, vector<1x896xf32>
    %25 = vector.broadcast %24 : vector<1x896xf32> to vector<8x896xf32>
    %26 = arith.addf %23, %25 : vector<8x896xf32>
    %c0_23 = arith.constant 0 : index
    %c0_24 = arith.constant 0 : index
    %27 = vector.load %arg10[%c0_23, %c0_24] : memref<8x896xf32, #tpu.memory_space<vmem>>, vector<8x896xf32>
    tpu.vector_store %arg10[%c0_23, %c0_24], %26 {strides = array<i32>} : memref<8x896xf32, #tpu.memory_space<vmem>>, vector<8x896xf32>,
    return
  }
  func.func @transform_0(%arg0: i32) -> (i32, i32) {
    %c0_i32 = arith.constant 0 : i32
    %c0_i32_0 = arith.constant 0 : i32
    return %arg0, %c0_i32 : i32, i32
  }
  func.func @transform_1(%arg0: i32) -> (i32, i32) {
    %c0_i32 = arith.constant 0 : i32
    %c0_i32_0 = arith.constant 0 : i32
    %c0_i32_1 = arith.constant 0 : i32
    return %c0_i32, %c0_i32_0 : i32, i32
  }
  func.func @transform_2(%arg0: i32) -> (i32, i32) {
    %c0_i32 = arith.constant 0 : i32
    %c0_i32_0 = arith.constant 0 : i32
    %c0_i32_1 = arith.constant 0 : i32
    return %c0_i32, %c0_i32_0 : i32, i32
  }
  func.func @transform_3(%arg0: i32) -> (i32, i32) {
    %c0_i32 = arith.constant 0 : i32
    %c0_i32_0 = arith.constant 0 : i32
    %c0_i32_1 = arith.constant 0 : i32
    return %c0_i32, %c0_i32_0 : i32, i32
  }
  func.func @transform_4(%arg0: i32) -> (i32, i32) {
    %c0_i32 = arith.constant 0 : i32
    %c0_i32_0 = arith.constant 0 : i32
    %c0_i32_1 = arith.constant 0 : i32
    return %c0_i32, %c0_i32_0 : i32, i32
  }
  func.func @transform_5(%arg0: i32) -> (i32, i32) {
    %c0_i32 = arith.constant 0 : i32
    %c0_i32_0 = arith.constant 0 : i32
    %c0_i32_1 = arith.constant 0 : i32
    return %c0_i32, %c0_i32_0 : i32, i32
  }
  func.func @transform_6(%arg0: i32) -> (i32, i32) {
    %c0_i32 = arith.constant 0 : i32
    %c0_i32_0 = arith.constant 0 : i32
    %c0_i32_1 = arith.constant 0 : i32
    return %c0_i32, %c0_i32_0 : i32, i32
  }
  func.func @transform_7(%arg0: i32) -> (i32, i32) {
    %c0_i32 = arith.constant 0 : i32
    %c0_i32_0 = arith.constant 0 : i32
    %c0_i32_1 = arith.constant 0 : i32
    return %c0_i32, %c0_i32_0 : i32, i32
  }
  func.func @transform_8(%arg0: i32) -> (i32, i32) {
    %c0_i32 = arith.constant 0 : i32
    %c0_i32_0 = arith.constant 0 : i32
    %c0_i32_1 = arith.constant 0 : i32
    return %c0_i32, %c0_i32_0 : i32, i32
  }
  func.func @transform_9(%arg0: i32) -> (i32, i32) {
    %c0_i32 = arith.constant 0 : i32
    %c0_i32_0 = arith.constant 0 : i32
    return %arg0, %c0_i32 : i32, i32
  }
}

</mosaic_0001>

<llo_original>
// kernel: tpu_custom_call.1
$region0: #{tpu_custom_call.1}
  #allocation0 [shape = 'u32[]', space=smem, size = 0x4, offset = 0x4, fixed_abs, tag = 'smem constant byte address 0x4 - core index']
  #allocation1 [shape = 'u32[144,128]{1,0:T(1,128)}', space=vmem, size = 0x12000, scoped, tag = 'internal scratch']
  %s0 = inlined_call_operand.vmem [shape: f32[8,896], index: 0, kind: input, shape index: {}]
  %s1 = inlined_call_operand.vmem [shape: f32[896,64], index: 1, kind: input, shape index: {}]
  %s2 = inlined_call_operand.vmem [shape: f32[1,64], index: 2, kind: input, shape index: {}]
  %s3 = inlined_call_operand.vmem [shape: f32[64,10], index: 3, kind: input, shape index: {}]
  %s4 = inlined_call_operand.vmem [shape: f32[1,10], index: 4, kind: input, shape index: {}]
  %s5 = inlined_call_operand.vmem [shape: f32[10,64], index: 5, kind: input, shape index: {}]
  %s6 = inlined_call_operand.vmem [shape: f32[1,64], index: 6, kind: input, shape index: {}]
  %s7 = inlined_call_operand.vmem [shape: f32[64,896], index: 7, kind: input, shape index: {}]
  %s8 = inlined_call_operand.vmem [shape: f32[1,896], index: 8, kind: input, shape index: {}]
  %s9 = inlined_call_operand.hbm [shape: f32[8,896], index: 9, kind: output, shape index: {}]
  %s10 = sld [smem:[#allocation0]]
  $region46: #{tpu_custom_call.1} parent=0
    _
  %s12 = ssub.s32 1, %s10
  %s13 = scalar_select 0, %s12, %s10
  $region1: #{tpu_custom_call.1} parent=0
    #allocation2 [shape = 'u8[28672]{0}', space=vmem, size = 0x7000, scoped, tag = 'output window, operand 0, single buffered']
    #allocation3 [shape = 's32[1]{0}', space=sflag, size = 0x4, scoped, tag = 'scoped memory for tpu_custom_call.1']
    %14 = vsyncpa [#allocation3], 0
    // Predicated region
    $region2: #{tpu_custom_call.1} parent=1 // pred_check
      _
    $region3: #{tpu_custom_call.1} parent=1 // pred_check_branch
      %16 = sbr.rel (0) target = $region5
    $region4: #{tpu_custom_call.1} parent=1 // pred_region
      _
    $region5: #{tpu_custom_call.1} parent=1 // pred_fallthru
      _
    // Predicated region
    $region6: #{tpu_custom_call.1} parent=1 // pred_check
      _
    $region7: #{tpu_custom_call.1} parent=1 // pred_check_branch
      %18 = sbr.rel (0) target = $region9
    $region8: #{tpu_custom_call.1} parent=1 // pred_region
      _
    $region9: #{tpu_custom_call.1} parent=1 // pred_fallthru
      _
    // Predicated region
    $region10: #{tpu_custom_call.1} parent=1 // pred_check
      _
    $region11: #{tpu_custom_call.1} parent=1 // pred_check_branch
      %20 = sbr.rel (0) target = $region13
    $region12: #{tpu_custom_call.1} parent=1 // pred_region
      _
    $region13: #{tpu_custom_call.1} parent=1 // pred_fallthru
      _
    // Predicated region
    $region14: #{tpu_custom_call.1} parent=1 // pred_check
      _
    $region15: #{tpu_custom_call.1} parent=1 // pred_check_branch
      %22 = sbr.rel (0) target = $region17
    $region16: #{tpu_custom_call.1} parent=1 // pred_region
      _
    $region17: #{tpu_custom_call.1} parent=1 // pred_fallthru
      _
    // Predicated region
    $region18: #{tpu_custom_call.1} parent=1 // pred_check
      _
    $region19: #{tpu_custom_call.1} parent=1 // pred_check_branch
      %24 = sbr.rel (0) target = $region21
    $region20: #{tpu_custom_call.1} parent=1 // pred_region
      _
    $region21: #{tpu_custom_call.1} parent=1 // pred_fallthru
      _
    // Predicated region
    $region22: #{tpu_custom_call.1} parent=1 // pred_check
      _
    $region23: #{tpu_custom_call.1} parent=1 // pred_check_branch
      %26 = sbr.rel (0) target = $region25
    $region24: #{tpu_custom_call.1} parent=1 // pred_region
      _
    $region25: #{tpu_custom_call.1} parent=1 // pred_fallthru
      _
    // Predicated region
    $region26: #{tpu_custom_call.1} parent=1 // pred_check
      _
    $region27: #{tpu_custom_call.1} parent=1 // pred_check_branch
      %28 = sbr.rel (0) target = $region29
    $region28: #{tpu_custom_call.1} parent=1 // pred_region
      _
    $region29: #{tpu_custom_call.1} parent=1 // pred_fallthru
      _
    // Predicated region
    $region30: #{tpu_custom_call.1} parent=1 // pred_check
      _
    $region31: #{tpu_custom_call.1} parent=1 // pred_check_branch
      %30 = sbr.rel (0) target = $region33
    $region32: #{tpu_custom_call.1} parent=1 // pred_region
      _
    $region33: #{tpu_custom_call.1} parent=1 // pred_fallthru
      _
    // Predicated region
    $region34: #{tpu_custom_call.1} parent=1 // pred_check
      _
    $region35: #{tpu_custom_call.1} parent=1 // pred_check_branch
      %32 = sbr.rel (0) target = $region37
    $region36: #{tpu_custom_call.1} parent=1 // pred_region
      _
    $region37: #{tpu_custom_call.1} parent=1 // pred_fallthru
      _
    %v33 = vld [vmem:[%s0] sm:$0xff]
    %v34 = vld [vmem:[%s0 + $0x8] sm:$0xff]
    %v35 = vld [vmem:[%s0 + $0x10] sm:$0xff]
    %v36 = vld [vmem:[%s0 + $0x18] sm:$0xff]
    %v37 = vld [vmem:[%s0 + $0x20] sm:$0xff]
    %v38 = vld [vmem:[%s0 + $0x28] sm:$0xff]
    %v39 = vld [vmem:[%s0 + $0x30] sm:$0xff]
    %v40 = vld [vmem:[%s1] sm:$0xff]
    %v41 = vld [vmem:[%s1 + $0x8] sm:$0xff]
    %v42 = vld [vmem:[%s1 + $0x10] sm:$0xff]
    %v43 = vld [vmem:[%s1 + $0x18] sm:$0xff]
    %v44 = vld [vmem:[%s1 + $0x20] sm:$0xff]
    %v45 = vld [vmem:[%s1 + $0x28] sm:$0xff]
    %v46 = vld [vmem:[%s1 + $0x30] sm:$0xff]
    %v47 = vld [vmem:[%s1 + $0x38] sm:$0xff]
    %v48 = vld [vmem:[%s1 + $0x40] sm:$0xff]
    %v49 = vld [vmem:[%s1 + $0x48] sm:$0xff]
    %v50 = vld [vmem:[%s1 + $0x50] sm:$0xff]
    %v51 = vld [vmem:[%s1 + $0x58] sm:$0xff]
    %v52 = vld [vmem:[%s1 + $0x60] sm:$0xff]
    %v53 = vld [vmem:[%s1 + $0x68] sm:$0xff]
    %v54 = vld [vmem:[%s1 + $0x70] sm:$0xff]
    %v55 = vld [vmem:[%s1 + $0x78] sm:$0xff]
    %v56 = vld [vmem:[%s1 + $0x80] sm:$0xff]
    %v57 = vld [vmem:[%s1 + $0x88] sm:$0xff]
    %v58 = vld [vmem:[%s1 + $0x90] sm:$0xff]
    %v59 = vld [vmem:[%s1 + $0x98] sm:$0xff]
    %v60 = vld [vmem:[%s1 + $0xa0] sm:$0xff]
    %v61 = vld [vmem:[%s1 + $0xa8] sm:$0xff]
    %v62 = vld [vmem:[%s1 + $0xb0] sm:$0xff]
    %v63 = vld [vmem:[%s1 + $0xb8] sm:$0xff]
    %v64 = vld [vmem:[%s1 + $0xc0] sm:$0xff]
    %v65 = vld [vmem:[%s1 + $0xc8] sm:$0xff]
    %v66 = vld [vmem:[%s1 + $0xd0] sm:$0xff]
    %v67 = vld [vmem:[%s1 + $0xd8] sm:$0xff]
    %v68 = vld [vmem:[%s1 + $0xe0] sm:$0xff]
    %v69 = vld [vmem:[%s1 + $0xe8] sm:$0xff]
    %v70 = vld [vmem:[%s1 + $0xf0] sm:$0xff]
    %v71 = vld [vmem:[%s1 + $0xf8] sm:$0xff]
    %v72 = vld [vmem:[%s1 + $0x100] sm:$0xff]
    %v73 = vld [vmem:[%s1 + $0x108] sm:$0xff]
    %v74 = vld [vmem:[%s1 + $0x110] sm:$0xff]
    %v75 = vld [vmem:[%s1 + $0x118] sm:$0xff]
    %v76 = vld [vmem:[%s1 + $0x120] sm:$0xff]
    %v77 = vld [vmem:[%s1 + $0x128] sm:$0xff]
    %v78 = vld [vmem:[%s1 + $0x130] sm:$0xff]
    %v79 = vld [vmem:[%s1 + $0x138] sm:$0xff]
    %v80 = vld [vmem:[%s1 + $0x140] sm:$0xff]
    %v81 = vld [vmem:[%s1 + $0x148] sm:$0xff]
    %v82 = vld [vmem:[%s1 + $0x150] sm:$0xff]
    %v83 = vld [vmem:[%s1 + $0x158] sm:$0xff]
    %v84 = vld [vmem:[%s1 + $0x160] sm:$0xff]
    %v85 = vld [vmem:[%s1 + $0x168] sm:$0xff]
    %v86 = vld [vmem:[%s1 + $0x170] sm:$0xff]
    %v87 = vld [vmem:[%s1 + $0x178] sm:$0xff]
    %v88 = vld [vmem:[%s1 + $0x180] sm:$0xff]
    %v89 = vld [vmem:[%s1 + $0x188] sm:$0xff]
    %v90 = vld [vmem:[%s1 + $0x190] sm:$0xff]
    %v91 = vld [vmem:[%s1 + $0x198] sm:$0xff]
    %v92 = vld [vmem:[%s1 + $0x1a0] sm:$0xff]
    %v93 = vld [vmem:[%s1 + $0x1a8] sm:$0xff]
    %v94 = vld [vmem:[%s1 + $0x1b0] sm:$0xff]
    %v95 = vld [vmem:[%s1 + $0x1b8] sm:$0xff]
    %v96 = vld [vmem:[%s1 + $0x1c0] sm:$0xff]
    %v97 = vld [vmem:[%s1 + $0x1c8] sm:$0xff]
    %v98 = vld [vmem:[%s1 + $0x1d0] sm:$0xff]
    %v99 = vld [vmem:[%s1 + $0x1d8] sm:$0xff]
    %v100 = vld [vmem:[%s1 + $0x1e0] sm:$0xff]
    %v101 = vld [vmem:[%s1 + $0x1e8] sm:$0xff]
    %v102 = vld [vmem:[%s1 + $0x1f0] sm:$0xff]
    %v103 = vld [vmem:[%s1 + $0x1f8] sm:$0xff]
    %v104 = vld [vmem:[%s1 + $0x200] sm:$0xff]
    %v105 = vld [vmem:[%s1 + $0x208] sm:$0xff]
    %v106 = vld [vmem:[%s1 + $0x210] sm:$0xff]
    %v107 = vld [vmem:[%s1 + $0x218] sm:$0xff]
    %v108 = vld [vmem:[%s1 + $0x220] sm:$0xff]
    %v109 = vld [vmem:[%s1 + $0x228] sm:$0xff]
    %v110 = vld [vmem:[%s1 + $0x230] sm:$0xff]
    %v111 = vld [vmem:[%s1 + $0x238] sm:$0xff]
    %v112 = vld [vmem:[%s1 + $0x240] sm:$0xff]
    %v113 = vld [vmem:[%s1 + $0x248] sm:$0xff]
    %v114 = vld [vmem:[%s1 + $0x250] sm:$0xff]
    %v115 = vld [vmem:[%s1 + $0x258] sm:$0xff]
    %v116 = vld [vmem:[%s1 + $0x260] sm:$0xff]
    %v117 = vld [vmem:[%s1 + $0x268] sm:$0xff]
    %v118 = vld [vmem:[%s1 + $0x270] sm:$0xff]
    %v119 = vld [vmem:[%s1 + $0x278] sm:$0xff]
    %v120 = vld [vmem:[%s1 + $0x280] sm:$0xff]
    %v121 = vld [vmem:[%s1 + $0x288] sm:$0xff]
    %v122 = vld [vmem:[%s1 + $0x290] sm:$0xff]
    %v123 = vld [vmem:[%s1 + $0x298] sm:$0xff]
    %v124 = vld [vmem:[%s1 + $0x2a0] sm:$0xff]
    %v125 = vld [vmem:[%s1 + $0x2a8] sm:$0xff]
    %v126 = vld [vmem:[%s1 + $0x2b0] sm:$0xff]
    %v127 = vld [vmem:[%s1 + $0x2b8] sm:$0xff]
    %v128 = vld [vmem:[%s1 + $0x2c0] sm:$0xff]
    %v129 = vld [vmem:[%s1 + $0x2c8] sm:$0xff]
    %v130 = vld [vmem:[%s1 + $0x2d0] sm:$0xff]
    %v131 = vld [vmem:[%s1 + $0x2d8] sm:$0xff]
    %v132 = vld [vmem:[%s1 + $0x2e0] sm:$0xff]
    %v133 = vld [vmem:[%s1 + $0x2e8] sm:$0xff]
    %v134 = vld [vmem:[%s1 + $0x2f0] sm:$0xff]
    %v135 = vld [vmem:[%s1 + $0x2f8] sm:$0xff]
    %v136 = vld [vmem:[%s1 + $0x300] sm:$0xff]
    %v137 = vld [vmem:[%s1 + $0x308] sm:$0xff]
    %v138 = vld [vmem:[%s1 + $0x310] sm:$0xff]
    %v139 = vld [vmem:[%s1 + $0x318] sm:$0xff]
    %v140 = vld [vmem:[%s1 + $0x320] sm:$0xff]
    %v141 = vld [vmem:[%s1 + $0x328] sm:$0xff]
    %v142 = vld [vmem:[%s1 + $0x330] sm:$0xff]
    %v143 = vld [vmem:[%s1 + $0x338] sm:$0xff]
    %v144 = vld [vmem:[%s1 + $0x340] sm:$0xff]
    %v145 = vld [vmem:[%s1 + $0x348] sm:$0xff]
    %v146 = vld [vmem:[%s1 + $0x350] sm:$0xff]
    %v147 = vld [vmem:[%s1 + $0x358] sm:$0xff]
    %v148 = vld [vmem:[%s1 + $0x360] sm:$0xff]
    %v149 = vld [vmem:[%s1 + $0x368] sm:$0xff]
    %v150 = vld [vmem:[%s1 + $0x370] sm:$0xff]
    %v151 = vld [vmem:[%s1 + $0x378] sm:$0xff]
    %v152 = vld [vmem:[%s2] sm:$0x1]
    %v154 = vlaneseq
    %v155 = vshrl.u32 %v154, 7
    %v156 = vsub.s32 0, %v155
    %v157 = vrot.slane %v152, %v156
    %159 = vmatprep.subr.mxu0 0.0
    %160 = vmatpush1.msra.mxu0 %v40
    %161 = vmatprep.subr.mxu0 0.0
    %162 = vmatpush1.msra.mxu0 %v41
    %163 = vmatprep.subr.mxu0 0.0
    %164 = vmatpush1.msra.mxu0 %v42
    %165 = vmatprep.subr.mxu0 0.0
    %166 = vmatpush1.msra.mxu0 %v43
    %167 = vmatprep.subr.mxu0 0.0
    %168 = vmatpush1.msra.mxu0 %v44
    %169 = vmatprep.subr.mxu0 0.0
    %170 = vmatpush1.msra.mxu0 %v45
    %171 = vmatprep.subr.mxu0 0.0
    %172 = vmatpush1.msra.mxu0 %v46
    %173 = vmatprep.subr.mxu0 0.0
    %174 = vmatpush1.msra.mxu0 %v47
    %175 = vmatprep.subr.mxu0 0.0
    %176 = vmatpush1.msra.mxu0 %v48
    %177 = vmatprep.subr.mxu0 0.0
    %178 = vmatpush1.msra.mxu0 %v49
    %179 = vmatprep.subr.mxu0 0.0
    %180 = vmatpush1.msra.mxu0 %v50
    %181 = vmatprep.subr.mxu0 0.0
    %182 = vmatpush1.msra.mxu0 %v51
    %183 = vmatprep.subr.mxu0 0.0
    %184 = vmatpush1.msra.mxu0 %v52
    %185 = vmatprep.subr.mxu0 0.0
    %186 = vmatpush1.msra.mxu0 %v53
    %187 = vmatprep.subr.mxu0 0.0
    %188 = vmatpush1.msra.mxu0 %v54
    %189 = vmatprep.subr.mxu0 0.0
    %190 = vmatpush1.msra.mxu0 %v55
    %191 = vmatprep.subr.mxu0 0.0
    %192 = vmatpush1.msra.mxu0 %v56
    %193 = vmatprep.subr.mxu0 0.0
    %194 = vmatpush1.msra.mxu0 %v57
    %195 = vmatprep.subr.mxu0 0.0
    %196 = vmatpush1.msra.mxu0 %v58
    %197 = vmatprep.subr.mxu0 0.0
    %198 = vmatpush1.msra.mxu0 %v59
    %199 = vmatprep.subr.mxu0 0.0
    %200 = vmatpush1.msra.mxu0 %v60
    %201 = vmatprep.subr.mxu0 0.0
    %202 = vmatpush1.msra.mxu0 %v61
    %203 = vmatprep.subr.mxu0 0.0
    %204 = vmatpush1.msra.mxu0 %v62
    %205 = vmatprep.subr.mxu0 0.0
    %206 = vmatpush1.msra.mxu0 %v63
    %207 = vmatprep.subr.mxu0 0.0
    %208 = vmatpush1.msra.mxu0 %v64
    %209 = vmatprep.subr.mxu0 0.0
    %210 = vmatpush1.msra.mxu0 %v65
    %211 = vmatprep.subr.mxu0 0.0
    %212 = vmatpush1.msra.mxu0 %v66
    %213 = vmatprep.subr.mxu0 0.0
    %214 = vmatpush1.msra.mxu0 %v67
    %215 = vmatprep.subr.mxu0 0.0
    %216 = vmatpush1.msra.mxu0 %v68
    %217 = vmatprep.subr.mxu0 0.0
    %218 = vmatpush1.msra.mxu0 %v69
    %219 = vmatprep.subr.mxu0 0.0
    %220 = vmatpush1.msra.mxu0 %v70
    %221 = vmatprep.subr.mxu0 0.0
    %222 = vmatpush1.msra.mxu0 %v71
    %223 = vmatprep.mubr.f32.mxu0 %v34
    %224 = vmatmul.mubr.f32.gmra.mrb[0].mxu0 %v33
    %v225 = vpop.f32.mrb[0].mxu0
    %v226 = vadd.f32 %v157, %v225
    %v227 = vpop.f32.mrb[0].mxu0
    %228 = vdwg.mxu0
    %229 = vmatprep.subr.mxu0 0.0
    %230 = vmatpush1.msra.mxu0 %v72
    %231 = vmatprep.subr.mxu0 0.0
    %232 = vmatpush1.msra.mxu0 %v73
    %233 = vmatprep.subr.mxu0 0.0
    %234 = vmatpush1.msra.mxu0 %v74
    %235 = vmatprep.subr.mxu0 0.0
    %236 = vmatpush1.msra.mxu0 %v75
    %237 = vmatprep.subr.mxu0 0.0
    %238 = vmatpush1.msra.mxu0 %v76
    %239 = vmatprep.subr.mxu0 0.0
    %240 = vmatpush1.msra.mxu0 %v77
    %241 = vmatprep.subr.mxu0 0.0
    %242 = vmatpush1.msra.mxu0 %v78
    %243 = vmatprep.subr.mxu0 0.0
    %244 = vmatpush1.msra.mxu0 %v79
    %245 = vmatprep.subr.mxu0 0.0
    %246 = vmatpush1.msra.mxu0 %v80
    %247 = vmatprep.subr.mxu0 0.0
    %248 = vmatpush1.msra.mxu0 %v81
    %249 = vmatprep.subr.mxu0 0.0
    %250 = vmatpush1.msra.mxu0 %v82
    %251 = vmatprep.subr.mxu0 0.0
    %252 = vmatpush1.msra.mxu0 %v83
    %253 = vmatprep.subr.mxu0 0.0
    %254 = vmatpush1.msra.mxu0 %v84
    %255 = vmatprep.subr.mxu0 0.0
    %256 = vmatpush1.msra.mxu0 %v85
    %257 = vmatprep.subr.mxu0 0.0
    %258 = vmatpush1.msra.mxu0 %v86
    %259 = vmatprep.subr.mxu0 0.0
    %260 = vmatpush1.msra.mxu0 %v87
    %261 = vmatprep.subr.mxu0 0.0
    %262 = vmatpush1.msra.mxu0 %v88
    %263 = vmatprep.subr.mxu0 0.0
    %264 = vmatpush1.msra.mxu0 %v89
    %265 = vmatprep.subr.mxu0 0.0
    %266 = vmatpush1.msra.mxu0 %v90
    %267 = vmatprep.subr.mxu0 0.0
    %268 = vmatpush1.msra.mxu0 %v91
    %269 = vmatprep.subr.mxu0 0.0
    %270 = vmatpush1.msra.mxu0 %v92
    %271 = vmatprep.subr.mxu0 0.0
    %272 = vmatpush1.msra.mxu0 %v93
    %273 = vmatprep.subr.mxu0 0.0
    %274 = vmatpush1.msra.mxu0 %v94
    %275 = vmatprep.subr.mxu0 0.0
    %276 = vmatpush1.msra.mxu0 %v95
    %277 = vmatprep.subr.mxu0 0.0
    %278 = vmatpush1.msra.mxu0 %v96
    %279 = vmatprep.subr.mxu0 0.0
    %280 = vmatpush1.msra.mxu0 %v97
    %281 = vmatprep.subr.mxu0 0.0
    %282 = vmatpush1.msra.mxu0 %v98
    %283 = vmatprep.subr.mxu0 0.0
    %284 = vmatpush1.msra.mxu0 %v99
    %285 = vmatprep.subr.mxu0 0.0
    %286 = vmatpush1.msra.mxu0 %v100
    %287 = vmatprep.subr.mxu0 0.0
    %288 = vmatpush1.msra.mxu0 %v101
    %289 = vmatprep.subr.mxu0 0.0
    %290 = vmatpush1.msra.mxu0 %v102
    %291 = vmatprep.subr.mxu0 0.0
    %292 = vmatpush1.msra.mxu0 %v103
    %293 = vmatprep.mubr.f32.mxu0 %v36
    %294 = vmatmul.mubr.f32.gmra.mrb[0].mxu0 %v35
    %v295 = vpop.f32.mrb[0].mxu0
    %v296 = vadd.f32 %v226, %v295
    %v297 = vpop.f32.mrb[0].mxu0
    %298 = vdwg.mxu0
    %299 = vmatprep.subr.mxu0 0.0
    %300 = vmatpush1.msra.mxu0 %v104
    %301 = vmatprep.subr.mxu0 0.0
    %302 = vmatpush1.msra.mxu0 %v105
    %303 = vmatprep.subr.mxu0 0.0
    %304 = vmatpush1.msra.mxu0 %v106
    %305 = vmatprep.subr.mxu0 0.0
    %306 = vmatpush1.msra.mxu0 %v107
    %307 = vmatprep.subr.mxu0 0.0
    %308 = vmatpush1.msra.mxu0 %v108
    %309 = vmatprep.subr.mxu0 0.0
    %310 = vmatpush1.msra.mxu0 %v109
    %311 = vmatprep.subr.mxu0 0.0
    %312 = vmatpush1.msra.mxu0 %v110
    %313 = vmatprep.subr.mxu0 0.0
    %314 = vmatpush1.msra.mxu0 %v111
    %315 = vmatprep.subr.mxu0 0.0
    %316 = vmatpush1.msra.mxu0 %v112
    %317 = vmatprep.subr.mxu0 0.0
    %318 = vmatpush1.msra.mxu0 %v113
    %319 = vmatprep.subr.mxu0 0.0
    %320 = vmatpush1.msra.mxu0 %v114
    %321 = vmatprep.subr.mxu0 0.0
    %322 = vmatpush1.msra.mxu0 %v115
    %323 = vmatprep.subr.mxu0 0.0
    %324 = vmatpush1.msra.mxu0 %v116
    %325 = vmatprep.subr.mxu0 0.0
    %326 = vmatpush1.msra.mxu0 %v117
    %327 = vmatprep.subr.mxu0 0.0
    %328 = vmatpush1.msra.mxu0 %v118
    %329 = vmatprep.subr.mxu0 0.0
    %330 = vmatpush1.msra.mxu0 %v119
    %331 = vmatprep.subr.mxu0 0.0
    %332 = vmatpush1.msra.mxu0 %v120
    %333 = vmatprep.subr.mxu0 0.0
    %334 = vmatpush1.msra.mxu0 %v121
    %335 = vmatprep.subr.mxu0 0.0
    %336 = vmatpush1.msra.mxu0 %v122
    %337 = vmatprep.subr.mxu0 0.0
    %338 = vmatpush1.msra.mxu0 %v123
    %339 = vmatprep.subr.mxu0 0.0
    %340 = vmatpush1.msra.mxu0 %v124
    %341 = vmatprep.subr.mxu0 0.0
    %342 = vmatpush1.msra.mxu0 %v125
    %343 = vmatprep.subr.mxu0 0.0
    %344 = vmatpush1.msra.mxu0 %v126
    %345 = vmatprep.subr.mxu0 0.0
    %346 = vmatpush1.msra.mxu0 %v127
    %347 = vmatprep.subr.mxu0 0.0
    %348 = vmatpush1.msra.mxu0 %v128
    %349 = vmatprep.subr.mxu0 0.0
    %350 = vmatpush1.msra.mxu0 %v129
    %351 = vmatprep.subr.mxu0 0.0
    %352 = vmatpush1.msra.mxu0 %v130
    %353 = vmatprep.subr.mxu0 0.0
    %354 = vmatpush1.msra.mxu0 %v131
    %355 = vmatprep.subr.mxu0 0.0
    %356 = vmatpush1.msra.mxu0 %v132
    %357 = vmatprep.subr.mxu0 0.0
    %358 = vmatpush1.msra.mxu0 %v133
    %359 = vmatprep.subr.mxu0 0.0
    %360 = vmatpush1.msra.mxu0 %v134
    %361 = vmatprep.subr.mxu0 0.0
    %362 = vmatpush1.msra.mxu0 %v135
    %363 = vmatprep.mubr.f32.mxu0 %v38
    %364 = vmatmul.mubr.f32.gmra.mrb[0].mxu0 %v37
    %v365 = vpop.f32.mrb[0].mxu0
    %v366 = vadd.f32 %v296, %v365
    %v367 = vpop.f32.mrb[0].mxu0
    %368 = vdwg.mxu0
    %369 = vmatprep.subr.mxu0 0.0
    %370 = vmatpush1.msra.mxu0 %v136
    %371 = vmatprep.subr.mxu0 0.0
    %372 = vmatpush1.msra.mxu0 %v137
    %373 = vmatprep.subr.mxu0 0.0
    %374 = vmatpush1.msra.mxu0 %v138
    %375 = vmatprep.subr.mxu0 0.0
    %376 = vmatpush1.msra.mxu0 %v139
    %377 = vmatprep.subr.mxu0 0.0
    %378 = vmatpush1.msra.mxu0 %v140
    %379 = vmatprep.subr.mxu0 0.0
    %380 = vmatpush1.msra.mxu0 %v141
    %381 = vmatprep.subr.mxu0 0.0
    %382 = vmatpush1.msra.mxu0 %v142
    %383 = vmatprep.subr.mxu0 0.0
    %384 = vmatpush1.msra.mxu0 %v143
    %385 = vmatprep.subr.mxu0 0.0
    %386 = vmatpush1.msra.mxu0 %v144
    %387 = vmatprep.subr.mxu0 0.0
    %388 = vmatpush1.msra.mxu0 %v145
    %389 = vmatprep.subr.mxu0 0.0
    %390 = vmatpush1.msra.mxu0 %v146
    %391 = vmatprep.subr.mxu0 0.0
    %392 = vmatpush1.msra.mxu0 %v147
    %393 = vmatprep.subr.mxu0 0.0
    %394 = vmatpush1.msra.mxu0 %v148
    %395 = vmatprep.subr.mxu0 0.0
    %396 = vmatpush1.msra.mxu0 %v149
    %397 = vmatprep.subr.mxu0 0.0
    %398 = vmatpush1.msra.mxu0 %v150
    %399 = vmatprep.subr.mxu0 0.0
    %400 = vmatpush1.msra.mxu0 %v151
    %401 = vmatprep.subr.mxu0 0.0
    %402 = vmatpush1.msra.mxu0 0.0
    %403 = vmatprep.subr.mxu0 0.0
    %404 = vmatpush1.msra.mxu0 0.0
    %405 = vmatprep.subr.mxu0 0.0
    %406 = vmatpush1.msra.mxu0 0.0
    %407 = vmatprep.subr.mxu0 0.0
    %408 = vmatpush1.msra.mxu0 0.0
    %409 = vmatprep.subr.mxu0 0.0
    %410 = vmatpush1.msra.mxu0 0.0
    %411 = vmatprep.subr.mxu0 0.0
    %412 = vmatpush1.msra.mxu0 0.0
    %413 = vmatprep.subr.mxu0 0.0
    %414 = vmatpush1.msra.mxu0 0.0
    %415 = vmatprep.subr.mxu0 0.0
    %416 = vmatpush1.msra.mxu0 0.0
    %417 = vmatprep.subr.mxu0 0.0
    %418 = vmatpush1.msra.mxu0 0.0
    %419 = vmatprep.subr.mxu0 0.0
    %420 = vmatpush1.msra.mxu0 0.0
    %421 = vmatprep.subr.mxu0 0.0
    %422 = vmatpush1.msra.mxu0 0.0
    %423 = vmatprep.subr.mxu0 0.0
    %424 = vmatpush1.msra.mxu0 0.0
    %425 = vmatprep.subr.mxu0 0.0
    %426 = vmatpush1.msra.mxu0 0.0
    %427 = vmatprep.subr.mxu0 0.0
    %428 = vmatpush1.msra.mxu0 0.0
    %429 = vmatprep.subr.mxu0 0.0
    %430 = vmatpush1.msra.mxu0 0.0
    %431 = vmatprep.subr.mxu0 0.0
    %432 = vmatpush1.msra.mxu0 0.0
    %433 = vmatprep.mubr.f32.mxu0 0.0
    %434 = vmatmul.mubr.f32.gmra.mrb[0].mxu0 %v39
    %v435 = vpop.f32.mrb[0].mxu0
    %v436 = vadd.f32 %v366, %v435
    %v437 = vpop.f32.mrb[0].mxu0
    %438 = vdwg.mxu0
    %v439 = vmax.f32 %v436, 0.0
    %v440 = vld [vmem:[%s3] sm:$0xff]
    %v441 = vld [vmem:[%s3 + $0x8] sm:$0xff]
    %v442 = vld [vmem:[%s3 + $0x10] sm:$0xff]
    %v443 = vld [vmem:[%s3 + $0x18] sm:$0xff]
    %v444 = vld [vmem:[%s3 + $0x20] sm:$0xff]
    %v445 = vld [vmem:[%s3 + $0x28] sm:$0xff]
    %v446 = vld [vmem:[%s3 + $0x30] sm:$0xff]
    %v447 = vld [vmem:[%s3 + $0x38] sm:$0xff]
    %v448 = vld [vmem:[%s4] sm:$0x1]
    %v450 = vlaneseq
    %v451 = vshrl.u32 %v450, 7
    %v452 = vsub.s32 0, %v451
    %v453 = vrot.slane %v448, %v452
    %vm455 = vcmask 523264
    %v457 = vsel %vm455, %v439, 0
    %459 = vmatprep.subr.mxu0 0.0
    %460 = vmatpush1.msra.mxu0 %v440
    %461 = vmatprep.subr.mxu0 0.0
    %462 = vmatpush1.msra.mxu0 %v441
    %463 = vmatprep.subr.mxu0 0.0
    %464 = vmatpush1.msra.mxu0 %v442
    %465 = vmatprep.subr.mxu0 0.0
    %466 = vmatpush1.msra.mxu0 %v443
    %467 = vmatprep.subr.mxu0 0.0
    %468 = vmatpush1.msra.mxu0 %v444
    %469 = vmatprep.subr.mxu0 0.0
    %470 = vmatpush1.msra.mxu0 %v445
    %471 = vmatprep.subr.mxu0 0.0
    %472 = vmatpush1.msra.mxu0 %v446
    %473 = vmatprep.subr.mxu0 0.0
    %474 = vmatpush1.msra.mxu0 %v447
    %475 = vmatprep.subr.mxu0 0.0
    %476 = vmatpush1.msra.mxu0 0.0
    %477 = vmatprep.subr.mxu0 0.0
    %478 = vmatpush1.msra.mxu0 0.0
    %479 = vmatprep.subr.mxu0 0.0
    %480 = vmatpush1.msra.mxu0 0.0
    %481 = vmatprep.subr.mxu0 0.0
    %482 = vmatpush1.msra.mxu0 0.0
    %483 = vmatprep.subr.mxu0 0.0
    %484 = vmatpush1.msra.mxu0 0.0
    %485 = vmatprep.subr.mxu0 0.0
    %486 = vmatpush1.msra.mxu0 0.0
    %487 = vmatprep.subr.mxu0 0.0
    %488 = vmatpush1.msra.mxu0 0.0
    %489 = vmatprep.subr.mxu0 0.0
    %490 = vmatpush1.msra.mxu0 0.0
    %491 = vmatprep.subr.mxu0 0.0
    %492 = vmatpush1.msra.mxu0 0.0
    %493 = vmatprep.subr.mxu0 0.0
    %494 = vmatpush1.msra.mxu0 0.0
    %495 = vmatprep.subr.mxu0 0.0
    %496 = vmatpush1.msra.mxu0 0.0
    %497 = vmatprep.subr.mxu0 0.0
    %498 = vmatpush1.msra.mxu0 0.0
    %499 = vmatprep.subr.mxu0 0.0
    %500 = vmatpush1.msra.mxu0 0.0
    %501 = vmatprep.subr.mxu0 0.0
    %502 = vmatpush1.msra.mxu0 0.0
    %503 = vmatprep.subr.mxu0 0.0
    %504 = vmatpush1.msra.mxu0 0.0
    %505 = vmatprep.subr.mxu0 0.0
    %506 = vmatpush1.msra.mxu0 0.0
    %507 = vmatprep.subr.mxu0 0.0
    %508 = vmatpush1.msra.mxu0 0.0
    %509 = vmatprep.subr.mxu0 0.0
    %510 = vmatpush1.msra.mxu0 0.0
    %511 = vmatprep.subr.mxu0 0.0
    %512 = vmatpush1.msra.mxu0 0.0
    %513 = vmatprep.subr.mxu0 0.0
    %514 = vmatpush1.msra.mxu0 0.0
    %515 = vmatprep.subr.mxu0 0.0
    %516 = vmatpush1.msra.mxu0 0.0
    %517 = vmatprep.subr.mxu0 0.0
    %518 = vmatpush1.msra.mxu0 0.0
    %519 = vmatprep.subr.mxu0 0.0
    %520 = vmatpush1.msra.mxu0 0.0
    %521 = vmatprep.subr.mxu0 0.0
    %522 = vmatpush1.msra.mxu0 0.0
    %523 = vmatprep.mubr.f32.mxu0 0.0
    %524 = vmatmul.mubr.f32.gmra.mrb[0].mxu0 %v457
    %v525 = vpop.f32.mrb[0].mxu0
    %v526 = vadd.f32 %v453, %v525
    %v527 = vpop.f32.mrb[0].mxu0
    %528 = vdwg.mxu0
    %v529 = vmax.f32 %v526, 0.0
    %v530 = vld [vmem:[%s5] sm:$0xff]
    %v531 = vld [vmem:[%s5 + $0x8] sm:$0x3]
    %v532 = vld [vmem:[%s6] sm:$0x1]
    %v534 = vlaneseq
    %v535 = vshrl.u32 %v534, 7
    %v536 = vsub.s32 0, %v535
    %v537 = vrot.slane %v532, %v536
    %vm539 = vcmask 80896
    %v541 = vsel %vm539, %v529, 0
    %vm543 = vcmask 1041408
    %v545 = vsel %vm543, %v531, 0
    %547 = vmatprep.subr.mxu0 0.0
    %548 = vmatpush1.msra.mxu0 %v530
    %549 = vmatprep.subr.mxu0 0.0
    %550 = vmatpush1.msra.mxu0 %v545
    %551 = vmatprep.subr.mxu0 0.0
    %552 = vmatpush1.msra.mxu0 0.0
    %553 = vmatprep.subr.mxu0 0.0
    %554 = vmatpush1.msra.mxu0 0.0
    %555 = vmatprep.subr.mxu0 0.0
    %556 = vmatpush1.msra.mxu0 0.0
    %557 = vmatprep.subr.mxu0 0.0
    %558 = vmatpush1.msra.mxu0 0.0
    %559 = vmatprep.subr.mxu0 0.0
    %560 = vmatpush1.msra.mxu0 0.0
    %561 = vmatprep.subr.mxu0 0.0
    %562 = vmatpush1.msra.mxu0 0.0
    %563 = vmatprep.subr.mxu0 0.0
    %564 = vmatpush1.msra.mxu0 0.0
    %565 = vmatprep.subr.mxu0 0.0
    %566 = vmatpush1.msra.mxu0 0.0
    %567 = vmatprep.subr.mxu0 0.0
    %568 = vmatpush1.msra.mxu0 0.0
    %569 = vmatprep.subr.mxu0 0.0
    %570 = vmatpush1.msra.mxu0 0.0
    %571 = vmatprep.subr.mxu0 0.0
    %572 = vmatpush1.msra.mxu0 0.0
    %573 = vmatprep.subr.mxu0 0.0
    %574 = vmatpush1.msra.mxu0 0.0
    %575 = vmatprep.subr.mxu0 0.0
    %576 = vmatpush1.msra.mxu0 0.0
    %577 = vmatprep.subr.mxu0 0.0
    %578 = vmatpush1.msra.mxu0 0.0
    %579 = vmatprep.subr.mxu0 0.0
    %580 = vmatpush1.msra.mxu0 0.0
    %581 = vmatprep.subr.mxu0 0.0
    %582 = vmatpush1.msra.mxu0 0.0
    %583 = vmatprep.subr.mxu0 0.0
    %584 = vmatpush1.msra.mxu0 0.0
    %585 = vmatprep.subr.mxu0 0.0
    %586 = vmatpush1.msra.mxu0 0.0
    %587 = vmatprep.subr.mxu0 0.0
    %588 = vmatpush1.msra.mxu0 0.0
    %589 = vmatprep.subr.mxu0 0.0
    %590 = vmatpush1.msra.mxu0 0.0
    %591 = vmatprep.subr.mxu0 0.0
    %592 = vmatpush1.msra.mxu0 0.0
    %593 = vmatprep.subr.mxu0 0.0
    %594 = vmatpush1.msra.mxu0 0.0
    %595 = vmatprep.subr.mxu0 0.0
    %596 = vmatpush1.msra.mxu0 0.0
    %597 = vmatprep.subr.mxu0 0.0
    %598 = vmatpush1.msra.mxu0 0.0
    %599 = vmatprep.subr.mxu0 0.0
    %600 = vmatpush1.msra.mxu0 0.0
    %601 = vmatprep.subr.mxu0 0.0
    %602 = vmatpush1.msra.mxu0 0.0
    %603 = vmatprep.subr.mxu0 0.0
    %604 = vmatpush1.msra.mxu0 0.0
    %605 = vmatprep.subr.mxu0 0.0
    %606 = vmatpush1.msra.mxu0 0.0
    %607 = vmatprep.subr.mxu0 0.0
    %608 = vmatpush1.msra.mxu0 0.0
    %609 = vmatprep.subr.mxu0 0.0
    %610 = vmatpush1.msra.mxu0 0.0
    %611 = vmatprep.mubr.f32.mxu0 0.0
    %612 = vmatmul.mubr.f32.gmra.mrb[0].mxu0 %v541
    %v613 = vpop.f32.mrb[0].mxu0
    %v614 = vadd.f32 %v537, %v613
    %v615 = vpop.f32.mrb[0].mxu0
    %616 = vdwg.mxu0
    %v617 = vmax.f32 %v614, 0.0
    %v618 = vld [vmem:[%s7] sm:$0xff]
    %v619 = vld [vmem:[%s7 + $0x8] sm:$0xff]
    %v620 = vld [vmem:[%s7 + $0x10] sm:$0xff]
    %v621 = vld [vmem:[%s7 + $0x18] sm:$0xff]
    %v622 = vld [vmem:[%s7 + $0x20] sm:$0xff]
    %v623 = vld [vmem:[%s7 + $0x28] sm:$0xff]
    %v624 = vld [vmem:[%s7 + $0x30] sm:$0xff]
    %v625 = vld [vmem:[%s7 + $0x38] sm:$0xff]
    %v626 = vld [vmem:[%s7 + $0x40] sm:$0xff]
    %v627 = vld [vmem:[%s7 + $0x48] sm:$0xff]
    %v628 = vld [vmem:[%s7 + $0x50] sm:$0xff]
    %v629 = vld [vmem:[%s7 + $0x58] sm:$0xff]
    %v630 = vld [vmem:[%s7 + $0x60] sm:$0xff]
    %v631 = vld [vmem:[%s7 + $0x68] sm:$0xff]
    %v632 = vld [vmem:[%s7 + $0x70] sm:$0xff]
    %v633 = vld [vmem:[%s7 + $0x78] sm:$0xff]
    %v634 = vld [vmem:[%s7 + $0x80] sm:$0xff]
    %v635 = vld [vmem:[%s7 + $0x88] sm:$0xff]
    %v636 = vld [vmem:[%s7 + $0x90] sm:$0xff]
    %v637 = vld [vmem:[%s7 + $0x98] sm:$0xff]
    %v638 = vld [vmem:[%s7 + $0xa0] sm:$0xff]
    %v639 = vld [vmem:[%s7 + $0xa8] sm:$0xff]
    %v640 = vld [vmem:[%s7 + $0xb0] sm:$0xff]
    %v641 = vld [vmem:[%s7 + $0xb8] sm:$0xff]
    %v642 = vld [vmem:[%s7 + $0xc0] sm:$0xff]
    %v643 = vld [vmem:[%s7 + $0xc8] sm:$0xff]
    %v644 = vld [vmem:[%s7 + $0xd0] sm:$0xff]
    %v645 = vld [vmem:[%s7 + $0xd8] sm:$0xff]
    %v646 = vld [vmem:[%s7 + $0xe0] sm:$0xff]
    %v647 = vld [vmem:[%s7 + $0xe8] sm:$0xff]
    %v648 = vld [vmem:[%s7 + $0xf0] sm:$0xff]
    %v649 = vld [vmem:[%s7 + $0xf8] sm:$0xff]
    %v650 = vld [vmem:[%s7 + $0x100] sm:$0xff]
    %v651 = vld [vmem:[%s7 + $0x108] sm:$0xff]
    %v652 = vld [vmem:[%s7 + $0x110] sm:$0xff]
    %v653 = vld [vmem:[%s7 + $0x118] sm:$0xff]
    %v654 = vld [vmem:[%s7 + $0x120] sm:$0xff]
    %v655 = vld [vmem:[%s7 + $0x128] sm:$0xff]
    %v656 = vld [vmem:[%s7 + $0x130] sm:$0xff]
    %v657 = vld [vmem:[%s7 + $0x138] sm:$0xff]
    %v658 = vld [vmem:[%s7 + $0x140] sm:$0xff]
    %v659 = vld [vmem:[%s7 + $0x148] sm:$0xff]
    %v660 = vld [vmem:[%s7 + $0x150] sm:$0xff]
    %v661 = vld [vmem:[%s7 + $0x158] sm:$0xff]
    %v662 = vld [vmem:[%s7 + $0x160] sm:$0xff]
    %v663 = vld [vmem:[%s7 + $0x168] sm:$0xff]
    %v664 = vld [vmem:[%s7 + $0x170] sm:$0xff]
    %v665 = vld [vmem:[%s7 + $0x178] sm:$0xff]
    %v666 = vld [vmem:[%s7 + $0x180] sm:$0xff]
    %v667 = vld [vmem:[%s7 + $0x188] sm:$0xff]
    %v668 = vld [vmem:[%s7 + $0x190] sm:$0xff]
    %v669 = vld [vmem:[%s7 + $0x198] sm:$0xff]
    %v670 = vld [vmem:[%s7 + $0x1a0] sm:$0xff]
    %v671 = vld [vmem:[%s7 + $0x1a8] sm:$0xff]
    %v672 = vld [vmem:[%s7 + $0x1b0] sm:$0xff]
    %v673 = vld [vmem:[%s7 + $0x1b8] sm:$0xff]
    %v674 = vld [vmem:[%s8] sm:$0xff]
    %v676 = vlaneseq
    %v677 = vshrl.u32 %v676, 7
    %v678 = vsub.s32 0, %v677
    %v679 = vrot.slane %v674, %v678
    %v680 = vlaneseq
    %v681 = vshrl.u32 %v680, 7
    %v682 = vsub.s32 1, %v681
    %v683 = vrot.slane %v674, %v682
    %v684 = vlaneseq
    %v685 = vshrl.u32 %v684, 7
    %v686 = vsub.s32 2, %v685
    %v687 = vrot.slane %v674, %v686
    %v688 = vlaneseq
    %v689 = vshrl.u32 %v688, 7
    %v690 = vsub.s32 3, %v689
    %v691 = vrot.slane %v674, %v690
    %v692 = vlaneseq
    %v693 = vshrl.u32 %v692, 7
    %v694 = vsub.s32 4, %v693
    %v695 = vrot.slane %v674, %v694
    %v696 = vlaneseq
    %v697 = vshrl.u32 %v696, 7
    %v698 = vsub.s32 5, %v697
    %v699 = vrot.slane %v674, %v698
    %v700 = vlaneseq
    %v701 = vshrl.u32 %v700, 7
    %v702 = vsub.s32 6, %v701
    %v703 = vrot.slane %v674, %v702
    %v712 = vsel %vm455, %v617, 0
    %714 = vmatprep.subr.mxu0 %v619
    %715 = vmatpush1.msra.mxu0 %v618
    %716 = vmatprep.subr.mxu0 %v626
    %717 = vmatpush1.msra.mxu0 %v625
    %718 = vmatprep.subr.mxu0 %v633
    %719 = vmatpush1.msra.mxu0 %v632
    %720 = vmatprep.subr.mxu0 %v640
    %721 = vmatpush1.msra.mxu0 %v639
    %722 = vmatprep.subr.mxu0 %v647
    %723 = vmatpush1.msra.mxu0 %v646
    %724 = vmatprep.subr.mxu0 %v654
    %725 = vmatpush1.msra.mxu0 %v653
    %726 = vmatprep.subr.mxu0 %v661
    %727 = vmatpush1.msra.mxu0 %v660
    %728 = vmatprep.subr.mxu0 %v668
    %729 = vmatpush1.msra.mxu0 %v667
    %730 = vmatprep.subr.mxu0 0.0
    %731 = vmatpush1.msra.mxu0 0.0
    %732 = vmatprep.subr.mxu0 0.0
    %733 = vmatpush1.msra.mxu0 0.0
    %734 = vmatprep.subr.mxu0 0.0
    %735 = vmatpush1.msra.mxu0 0.0
    %736 = vmatprep.subr.mxu0 0.0
    %737 = vmatpush1.msra.mxu0 0.0
    %738 = vmatprep.subr.mxu0 0.0
    %739 = vmatpush1.msra.mxu0 0.0
    %740 = vmatprep.subr.mxu0 0.0
    %741 = vmatpush1.msra.mxu0 0.0
    %742 = vmatprep.subr.mxu0 0.0
    %743 = vmatpush1.msra.mxu0 0.0
    %744 = vmatprep.subr.mxu0 0.0
    %745 = vmatpush1.msra.mxu0 0.0
    %746 = vmatprep.subr.mxu0 0.0
    %747 = vmatpush1.msra.mxu0 0.0
    %748 = vmatprep.subr.mxu0 0.0
    %749 = vmatpush1.msra.mxu0 0.0
    %750 = vmatprep.subr.mxu0 0.0
    %751 = vmatpush1.msra.mxu0 0.0
    %752 = vmatprep.subr.mxu0 0.0
    %753 = vmatpush1.msra.mxu0 0.0
    %754 = vmatprep.subr.mxu0 0.0
    %755 = vmatpush1.msra.mxu0 0.0
    %756 = vmatprep.subr.mxu0 0.0
    %757 = vmatpush1.msra.mxu0 0.0
    %758 = vmatprep.subr.mxu0 0.0
    %759 = vmatpush1.msra.mxu0 0.0
    %760 = vmatprep.subr.mxu0 0.0
    %761 = vmatpush1.msra.mxu0 0.0
    %762 = vmatprep.subr.mxu0 0.0
    %763 = vmatpush1.msra.mxu0 0.0
    %764 = vmatprep.subr.mxu0 0.0
    %765 = vmatpush1.msra.mxu0 0.0
    %766 = vmatprep.subr.mxu0 0.0
    %767 = vmatpush1.msra.mxu0 0.0
    %768 = vmatprep.subr.mxu0 0.0
    %769 = vmatpush1.msra.mxu0 0.0
    %770 = vmatprep.subr.mxu0 0.0
    %771 = vmatpush1.msra.mxu0 0.0
    %772 = vmatprep.subr.mxu0 0.0
    %773 = vmatpush1.msra.mxu0 0.0
    %774 = vmatprep.subr.mxu0 0.0
    %775 = vmatpush1.msra.mxu0 0.0
    %776 = vmatprep.subr.mxu0 0.0
    %777 = vmatpush1.msra.mxu0 0.0
    %778 = vmatprep.mubr.f32.mxu0 0.0
    %779 = vmatmul.mubr.f32.gmra.mrb[0].mxu0 %v712
    %v780 = vpop.f32.mrb[0].mxu0
    %v781 = vadd.f32 %v679, %v780
    %v782 = vpop.f32.mrb[0].mxu0
    %v783 = vadd.f32 %v683, %v782
    %784 = vdwg.mxu0
    %785 = vmatprep.subr.mxu0 %v621
    %786 = vmatpush1.msra.mxu0 %v620
    %787 = vmatprep.subr.mxu0 %v628
    %788 = vmatpush1.msra.mxu0 %v627
    %789 = vmatprep.subr.mxu0 %v635
    %790 = vmatpush1.msra.mxu0 %v634
    %791 = vmatprep.subr.mxu0 %v642
    %792 = vmatpush1.msra.mxu0 %v641
    %793 = vmatprep.subr.mxu0 %v649
    %794 = vmatpush1.msra.mxu0 %v648
    %795 = vmatprep.subr.mxu0 %v656
    %796 = vmatpush1.msra.mxu0 %v655
    %797 = vmatprep.subr.mxu0 %v663
    %798 = vmatpush1.msra.mxu0 %v662
    %799 = vmatprep.subr.mxu0 %v670
    %800 = vmatpush1.msra.mxu0 %v669
    %801 = vmatprep.subr.mxu0 0.0
    %802 = vmatpush1.msra.mxu0 0.0
    %803 = vmatprep.subr.mxu0 0.0
    %804 = vmatpush1.msra.mxu0 0.0
    %805 = vmatprep.subr.mxu0 0.0
    %806 = vmatpush1.msra.mxu0 0.0
    %807 = vmatprep.subr.mxu0 0.0
    %808 = vmatpush1.msra.mxu0 0.0
    %809 = vmatprep.subr.mxu0 0.0
    %810 = vmatpush1.msra.mxu0 0.0
    %811 = vmatprep.subr.mxu0 0.0
    %812 = vmatpush1.msra.mxu0 0.0
    %813 = vmatprep.subr.mxu0 0.0
    %814 = vmatpush1.msra.mxu0 0.0
    %815 = vmatprep.subr.mxu0 0.0
    %816 = vmatpush1.msra.mxu0 0.0
    %817 = vmatprep.subr.mxu0 0.0
    %818 = vmatpush1.msra.mxu0 0.0
    %819 = vmatprep.subr.mxu0 0.0
    %820 = vmatpush1.msra.mxu0 0.0
    %821 = vmatprep.subr.mxu0 0.0
    %822 = vmatpush1.msra.mxu0 0.0
    %823 = vmatprep.subr.mxu0 0.0
    %824 = vmatpush1.msra.mxu0 0.0
    %825 = vmatprep.subr.mxu0 0.0
    %826 = vmatpush1.msra.mxu0 0.0
    %827 = vmatprep.subr.mxu0 0.0
    %828 = vmatpush1.msra.mxu0 0.0
    %829 = vmatprep.subr.mxu0 0.0
    %830 = vmatpush1.msra.mxu0 0.0
    %831 = vmatprep.subr.mxu0 0.0
    %832 = vmatpush1.msra.mxu0 0.0
    %833 = vmatprep.subr.mxu0 0.0
    %834 = vmatpush1.msra.mxu0 0.0
    %835 = vmatprep.subr.mxu0 0.0
    %836 = vmatpush1.msra.mxu0 0.0
    %837 = vmatprep.subr.mxu0 0.0
    %838 = vmatpush1.msra.mxu0 0.0
    %839 = vmatprep.subr.mxu0 0.0
    %840 = vmatpush1.msra.mxu0 0.0
    %841 = vmatprep.subr.mxu0 0.0
    %842 = vmatpush1.msra.mxu0 0.0
    %843 = vmatprep.subr.mxu0 0.0
    %844 = vmatpush1.msra.mxu0 0.0
    %845 = vmatprep.subr.mxu0 0.0
    %846 = vmatpush1.msra.mxu0 0.0
    %847 = vmatprep.subr.mxu0 0.0
    %848 = vmatpush1.msra.mxu0 0.0
    %849 = vmatprep.mubr.f32.mxu0 0.0
    %850 = vmatmul.mubr.f32.gmra.mrb[0].mxu0 %v712
    %v851 = vpop.f32.mrb[0].mxu0
    %v852 = vadd.f32 %v687, %v851
    %v853 = vpop.f32.mrb[0].mxu0
    %v854 = vadd.f32 %v691, %v853
    %855 = vdwg.mxu0
    %856 = vmatprep.subr.mxu0 %v623
    %857 = vmatpush1.msra.mxu0 %v622
    %858 = vmatprep.subr.mxu0 %v630
    %859 = vmatpush1.msra.mxu0 %v629
    %860 = vmatprep.subr.mxu0 %v637
    %861 = vmatpush1.msra.mxu0 %v636
    %862 = vmatprep.subr.mxu0 %v644
    %863 = vmatpush1.msra.mxu0 %v643
    %864 = vmatprep.subr.mxu0 %v651
    %865 = vmatpush1.msra.mxu0 %v650
    %866 = vmatprep.subr.mxu0 %v658
    %867 = vmatpush1.msra.mxu0 %v657
    %868 = vmatprep.subr.mxu0 %v665
    %869 = vmatpush1.msra.mxu0 %v664
    %870 = vmatprep.subr.mxu0 %v672
    %871 = vmatpush1.msra.mxu0 %v671
    %872 = vmatprep.subr.mxu0 0.0
    %873 = vmatpush1.msra.mxu0 0.0
    %874 = vmatprep.subr.mxu0 0.0
    %875 = vmatpush1.msra.mxu0 0.0
    %876 = vmatprep.subr.mxu0 0.0
    %877 = vmatpush1.msra.mxu0 0.0
    %878 = vmatprep.subr.mxu0 0.0
    %879 = vmatpush1.msra.mxu0 0.0
    %880 = vmatprep.subr.mxu0 0.0
    %881 = vmatpush1.msra.mxu0 0.0
    %882 = vmatprep.subr.mxu0 0.0
    %883 = vmatpush1.msra.mxu0 0.0
    %884 = vmatprep.subr.mxu0 0.0
    %885 = vmatpush1.msra.mxu0 0.0
    %886 = vmatprep.subr.mxu0 0.0
    %887 = vmatpush1.msra.mxu0 0.0
    %888 = vmatprep.subr.mxu0 0.0
    %889 = vmatpush1.msra.mxu0 0.0
    %890 = vmatprep.subr.mxu0 0.0
    %891 = vmatpush1.msra.mxu0 0.0
    %892 = vmatprep.subr.mxu0 0.0
    %893 = vmatpush1.msra.mxu0 0.0
    %894 = vmatprep.subr.mxu0 0.0
    %895 = vmatpush1.msra.mxu0 0.0
    %896 = vmatprep.subr.mxu0 0.0
    %897 = vmatpush1.msra.mxu0 0.0
    %898 = vmatprep.subr.mxu0 0.0
    %899 = vmatpush1.msra.mxu0 0.0
    %900 = vmatprep.subr.mxu0 0.0
    %901 = vmatpush1.msra.mxu0 0.0
    %902 = vmatprep.subr.mxu0 0.0
    %903 = vmatpush1.msra.mxu0 0.0
    %904 = vmatprep.subr.mxu0 0.0
    %905 = vmatpush1.msra.mxu0 0.0
    %906 = vmatprep.subr.mxu0 0.0
    %907 = vmatpush1.msra.mxu0 0.0
    %908 = vmatprep.subr.mxu0 0.0
    %909 = vmatpush1.msra.mxu0 0.0
    %910 = vmatprep.subr.mxu0 0.0
    %911 = vmatpush1.msra.mxu0 0.0
    %912 = vmatprep.subr.mxu0 0.0
    %913 = vmatpush1.msra.mxu0 0.0
    %914 = vmatprep.subr.mxu0 0.0
    %915 = vmatpush1.msra.mxu0 0.0
    %916 = vmatprep.subr.mxu0 0.0
    %917 = vmatpush1.msra.mxu0 0.0
    %918 = vmatprep.subr.mxu0 0.0
    %919 = vmatpush1.msra.mxu0 0.0
    %920 = vmatprep.mubr.f32.mxu0 0.0
    %921 = vmatmul.mubr.f32.gmra.mrb[0].mxu0 %v712
    %v922 = vpop.f32.mrb[0].mxu0
    %v923 = vadd.f32 %v695, %v922
    %v924 = vpop.f32.mrb[0].mxu0
    %v925 = vadd.f32 %v699, %v924
    %926 = vdwg.mxu0
    %927 = vmatprep.subr.mxu0 0.0
    %928 = vmatpush1.msra.mxu0 %v624
    %929 = vmatprep.subr.mxu0 0.0
    %930 = vmatpush1.msra.mxu0 %v631
    %931 = vmatprep.subr.mxu0 0.0
    %932 = vmatpush1.msra.mxu0 %v638
    %933 = vmatprep.subr.mxu0 0.0
    %934 = vmatpush1.msra.mxu0 %v645
    %935 = vmatprep.subr.mxu0 0.0
    %936 = vmatpush1.msra.mxu0 %v652
    %937 = vmatprep.subr.mxu0 0.0
    %938 = vmatpush1.msra.mxu0 %v659
    %939 = vmatprep.subr.mxu0 0.0
    %940 = vmatpush1.msra.mxu0 %v666
    %941 = vmatprep.subr.mxu0 0.0
    %942 = vmatpush1.msra.mxu0 %v673
    %943 = vmatprep.subr.mxu0 0.0
    %944 = vmatpush1.msra.mxu0 0.0
    %945 = vmatprep.subr.mxu0 0.0
    %946 = vmatpush1.msra.mxu0 0.0
    %947 = vmatprep.subr.mxu0 0.0
    %948 = vmatpush1.msra.mxu0 0.0
    %949 = vmatprep.subr.mxu0 0.0
    %950 = vmatpush1.msra.mxu0 0.0
    %951 = vmatprep.subr.mxu0 0.0
    %952 = vmatpush1.msra.mxu0 0.0
    %953 = vmatprep.subr.mxu0 0.0
    %954 = vmatpush1.msra.mxu0 0.0
    %955 = vmatprep.subr.mxu0 0.0
    %956 = vmatpush1.msra.mxu0 0.0
    %957 = vmatprep.subr.mxu0 0.0
    %958 = vmatpush1.msra.mxu0 0.0
    %959 = vmatprep.subr.mxu0 0.0
    %960 = vmatpush1.msra.mxu0 0.0
    %961 = vmatprep.subr.mxu0 0.0
    %962 = vmatpush1.msra.mxu0 0.0
    %963 = vmatprep.subr.mxu0 0.0
    %964 = vmatpush1.msra.mxu0 0.0
    %965 = vmatprep.subr.mxu0 0.0
    %966 = vmatpush1.msra.mxu0 0.0
    %967 = vmatprep.subr.mxu0 0.0
    %968 = vmatpush1.msra.mxu0 0.0
    %969 = vmatprep.subr.mxu0 0.0
    %970 = vmatpush1.msra.mxu0 0.0
    %971 = vmatprep.subr.mxu0 0.0
    %972 = vmatpush1.msra.mxu0 0.0
    %973 = vmatprep.subr.mxu0 0.0
    %974 = vmatpush1.msra.mxu0 0.0
    %975 = vmatprep.subr.mxu0 0.0
    %976 = vmatpush1.msra.mxu0 0.0
    %977 = vmatprep.subr.mxu0 0.0
    %978 = vmatpush1.msra.mxu0 0.0
    %979 = vmatprep.subr.mxu0 0.0
    %980 = vmatpush1.msra.mxu0 0.0
    %981 = vmatprep.subr.mxu0 0.0
    %982 = vmatpush1.msra.mxu0 0.0
    %983 = vmatprep.subr.mxu0 0.0
    %984 = vmatpush1.msra.mxu0 0.0
    %985 = vmatprep.subr.mxu0 0.0
    %986 = vmatpush1.msra.mxu0 0.0
    %987 = vmatprep.subr.mxu0 0.0
    %988 = vmatpush1.msra.mxu0 0.0
    %989 = vmatprep.subr.mxu0 0.0
    %990 = vmatpush1.msra.mxu0 0.0
    %991 = vmatprep.mubr.f32.mxu0 0.0
    %992 = vmatmul.mubr.f32.gmra.mrb[0].mxu0 %v712
    %v993 = vpop.f32.mrb[0].mxu0
    %v994 = vadd.f32 %v703, %v993
    %v995 = vpop.f32.mrb[0].mxu0
    %996 = vdwg.mxu0
    %997 = vst [vmem:[#allocation2] sm:$0xff] %v781
    %998 = vst [vmem:[#allocation2 + $0x8] sm:$0xff] %v783
    %999 = vst [vmem:[#allocation2 + $0x10] sm:$0xff] %v852
    %1000 = vst [vmem:[#allocation2 + $0x18] sm:$0xff] %v854
    %1001 = vst [vmem:[#allocation2 + $0x20] sm:$0xff] %v923
    %1002 = vst [vmem:[#allocation2 + $0x28] sm:$0xff] %v925
    %1003 = vst [vmem:[#allocation2 + $0x30] sm:$0xff] %v994
    // Predicated region
    $region38: #{tpu_custom_call.1} parent=1 // pred_check
      _
    $region39: #{tpu_custom_call.1} parent=1 // pred_check_branch
      %1005 = sbr.rel (0) target = $region41
    $region40: #{tpu_custom_call.1} parent=1 // pred_region
      %s1007 = ssub.s32 896, 896
      %1008 = vsyncadd [#allocation3], %s1007
      %s1010 = sshll.u32 [#allocation2], 4
      %s1011 = int_to_ptr.vmem [resolvable:$true] %s1010
      %1013 = dma.vmem_to_hbm [thread:$0]  %s1011, 896, %s9, [#allocation3]
    $region41: #{tpu_custom_call.1} parent=1 // pred_fallthru
      _
    // Predicated region
    $region42: #{tpu_custom_call.1} parent=1 // pred_check
      _
    $region43: #{tpu_custom_call.1} parent=1 // pred_check_branch
      %1015 = sbr.rel (0) target = $region45
    $region44: #{tpu_custom_call.1} parent=1 // pred_region
      %1016 = dma.done [#allocation3], 896
    $region45: #{tpu_custom_call.1} parent=1 // pred_fallthru
      _
    %1017 = vsyncpa [#allocation3], 1

</llo_original>
